<compile_context>
chip_gen: v7x
topology: tpu7x:2x2x1
jax: 0.10.0
libtpu: 0.0.40
codegen_flags: <defaults>
</compile_context>

<pallas_src>
import jax
import jax.numpy as jnp
from jax.experimental import pallas as pl
from jax.experimental.pallas import tpu as pltpu


def _round_up(v, m):
    return (v + m - 1) // m * m


def _linres_kernel(x_ref, w1_ref, b1_ref, w2_ref, b2_ref, w3_ref, b3_ref, o_ref):
    # x arrives f32; cast to bf16 in-kernel (MXU-native). Accumulate in f32,
    # add f32 biases, downcast to bf16 before each ReLU (equivalent & cheaper).
    x = x_ref[...].astype(jnp.bfloat16)

    h = jnp.dot(x, w1_ref[...], preferred_element_type=jnp.float32) + b1_ref[...]
    h = jnp.maximum(h.astype(jnp.bfloat16), 0)            # relu

    h = jnp.dot(h, w2_ref[...], preferred_element_type=jnp.float32) + b2_ref[...]
    h = jnp.maximum(h.astype(jnp.bfloat16), 0)            # relu

    o = jnp.dot(h, w3_ref[...], preferred_element_type=jnp.float32) + b3_ref[...]
    o_ref[...] = o.astype(o_ref.dtype)


def prepare_params(params):
    """One-time prep: transpose PyTorch (out,in) weights to (in,out), cast to
    bf16, and zero-pad ONLY the hidden (num_filters) dim to a lane-friendly
    multiple. Fan-in of lin1 and fan-out of lin3 stay at the true in_ch so the
    kernel's x/out streams carry no padding. Exact w.r.t. the unpadded math."""
    nf, in_ch = params["w1"].shape
    # 256-aligned hidden dim fills the 256-wide MXU on v6e/v7x once it matters.
    nf_p = _round_up(nf, 256 if nf >= 256 else 128)

    def pad_w(w_t, rows, cols):                            # w_t: (fan_in, fan_out)
        return jnp.pad(w_t.astype(jnp.bfloat16),
                       ((0, rows - w_t.shape[0]), (0, cols - w_t.shape[1])))

    def pad_b(b, cols):
        return jnp.pad(b.astype(jnp.float32), (0, cols - b.shape[0])).reshape(1, cols)

    return {
        "w1": pad_w(params["w1"].T, in_ch, nf_p), "b1": pad_b(params["b1"], nf_p),
        "w2": pad_w(params["w2"].T, nf_p, nf_p), "b2": pad_b(params["b2"], nf_p),
        "w3": pad_w(params["w3"].T, nf_p, in_ch), "b3": pad_b(params["b3"], in_ch),
    }


def linear_residual_block(x, prep):
    """x: [B, in_ch] float32. prep: output of prepare_params."""
    B, in_ch = x.shape
    w1, b1 = prep["w1"], prep["b1"]
    w2, b2 = prep["w2"], prep["b2"]
    w3, b3 = prep["w3"], prep["b3"]
    nf_p = w1.shape[1]

    # Batch tiling: big tiles (better HBM-roofline fraction), sublane-aligned,
    # but keep >= 2 grid steps when possible so v7x's second TC has work.
    B8 = _round_up(B, 8)
    tB = min(512, B8)
    if B8 > 8 and pl.cdiv(B8, tB) < 2:
        tB = _round_up(pl.cdiv(B8, 2), 8)
    grid = pl.cdiv(B, tB)            # no batch over-padding; last tile may be partial

    # Constant-index operands: stay VMEM-resident, single-buffered (no point
    # double-buffering blocks whose index never changes).
    def const(shape):
        return pl.BlockSpec(shape, lambda i: (0,) * len(shape),
                            pipeline_mode=pl.Buffered(1))

    # Raise the scoped VMEM limit only when the resident weights + tiles need it.
    weight_bytes = 2 * (in_ch * nf_p + nf_p * nf_p + nf_p * in_ch) \
        + 4 * (2 * nf_p + in_ch)
    io_bytes = 2 * 2 * 4 * tB * in_ch                      # x + out f32, double-buffered
    act_bytes = tB * nf_p * (4 + 2) * 2                    # f32/bf16 intermediates (rough)
    vmem_est = (weight_bytes + io_bytes + act_bytes) * 3 // 2 + (1 << 20)
    cp_kwargs = dict(dimension_semantics=("parallel",))
    if vmem_est > (32 << 20):
        cp_kwargs["vmem_limit_bytes"] = min(vmem_est, 64 << 20)

    return pl.pallas_call(
        _linres_kernel,
        out_shape=jax.ShapeDtypeStruct((B, in_ch), x.dtype),
        grid=(grid,),
        in_specs=[
            pl.BlockSpec((tB, in_ch), lambda i: (i, 0)),   # x: per-step batch tile
            const((in_ch, nf_p)),                          # w1 (VMEM-resident)
            const((1, nf_p)),                              # b1
            const((nf_p, nf_p)),                           # w2
            const((1, nf_p)),                              # b2
            const((nf_p, in_ch)),                          # w3
            const((1, in_ch)),                             # b3
        ],
        out_specs=pl.BlockSpec((tB, in_ch), lambda i: (i, 0)),
        compiler_params=pltpu.CompilerParams(**cp_kwargs),
    )(x, w1, b1, w2, b2, w3, b3)


def init_params(key, in_ch, num_filters):
    """Deterministic init mimicking PyTorch nn.Linear default (uniform +/- 1/sqrt(fan_in))."""
    ks = jax.random.split(key, 6)

    def lin(kw, kb, fan_in, fan_out):
        bound = 1.0 / jnp.sqrt(fan_in)
        w = jax.random.uniform(kw, (fan_out, fan_in), jnp.float32, -bound, bound)
        b = jax.random.uniform(kb, (fan_out,), jnp.float32, -bound, bound)
        return w, b

    w1, b1 = lin(ks[0], ks[1], in_ch, num_filters)
    w2, b2 = lin(ks[2], ks[3], num_filters, num_filters)
    w3, b3 = lin(ks[4], ks[5], num_filters, in_ch)
    return {"w1": w1, "b1": b1, "w2": w2, "b2": b2, "w3": w3, "b3": b3}


def reference(x, p):
    h = jnp.maximum(x @ p["w1"].T + p["b1"], 0.0)
    h = jnp.maximum(h @ p["w2"].T + p["b2"], 0.0)
    return h @ p["w3"].T + p["b3"]


if __name__ == "__main__":
    key = jax.random.PRNGKey(0)
    k_x, k_p = jax.random.split(key)

    # Small shapes consistent with the module.
    B, in_ch, num_filters = 8, 32, 64
    x = jax.random.normal(k_x, (B, in_ch), jnp.float32)
    params = init_params(k_p, in_ch, num_filters)

    prep = prepare_params(params)                   # one-time weight prep (hoisted)
    fwd = jax.jit(linear_residual_block)

    out = jax.block_until_ready(fwd(x, prep))
    ref = reference(x, params)
    assert out.shape == (B, in_ch)
    # bf16 operands (f32 accumulation) -> bf16-appropriate tolerance.
    assert jnp.allclose(out, ref, atol=5e-2, rtol=5e-2), "mismatch vs reference"

    # Second config exercising the multi-step grid + partial last tile path.
    B2, in_ch2, nf2 = 300, 48, 96
    k_x2, k_p2 = jax.random.split(k_p)
    x2 = jax.random.normal(k_x2, (B2, in_ch2), jnp.float32)
    params2 = init_params(k_p2, in_ch2, nf2)
    out2 = jax.block_until_ready(jax.jit(linear_residual_block)(x2, prepare_params(params2)))
    ref2 = reference(x2, params2)
    assert out2.shape == (B2, in_ch2)
    assert jnp.allclose(out2, ref2, atol=5e-2, rtol=5e-2), "mismatch vs reference (tiled)"

    print("KERNEL_OK")
</pallas_src>

<mosaic_0001>
module attributes {stable_mosaic.version = 11 : i64} {
  func.func @_linres_kernel(%arg0: i32, %arg1: memref<8x32xf32, #tpu.memory_space<vmem>>, %arg2: memref<32x128xbf16, #tpu.memory_space<vmem>>, %arg3: memref<1x128xf32, #tpu.memory_space<vmem>>, %arg4: memref<128x128xbf16, #tpu.memory_space<vmem>>, %arg5: memref<1x128xf32, #tpu.memory_space<vmem>>, %arg6: memref<128x32xbf16, #tpu.memory_space<vmem>>, %arg7: memref<1x32xf32, #tpu.memory_space<vmem>>, %arg8: memref<8x32xf32, #tpu.memory_space<vmem>>) attributes {dimension_semantics = [#tpu.dimension_semantics<parallel>], iteration_bounds = array<i64: 1>, scalar_prefetch = 0 : i64, scratch_operands = 0 : i64, tpu.core_type = #tpu.core_type<tc>, window_params = [{transform_indices = @transform_0, window_bounds = array<i64: 8, 32>}, {pipeline_mode = #tpu.pipeline_mode<synchronous>, transform_indices = @transform_1, window_bounds = array<i64: 32, 128>}, {pipeline_mode = #tpu.pipeline_mode<synchronous>, transform_indices = @transform_2, window_bounds = array<i64: 1, 128>}, {pipeline_mode = #tpu.pipeline_mode<synchronous>, transform_indices = @transform_3, window_bounds = array<i64: 128, 128>}, {pipeline_mode = #tpu.pipeline_mode<synchronous>, transform_indices = @transform_4, window_bounds = array<i64: 1, 128>}, {pipeline_mode = #tpu.pipeline_mode<synchronous>, transform_indices = @transform_5, window_bounds = array<i64: 128, 32>}, {pipeline_mode = #tpu.pipeline_mode<synchronous>, transform_indices = @transform_6, window_bounds = array<i64: 1, 32>}, {transform_indices = @transform_7, window_bounds = array<i64: 8, 32>}]} {
    %c0 = arith.constant 0 : index
    %c0_0 = arith.constant 0 : index
    %0 = vector.load %arg1[%c0, %c0_0] : memref<8x32xf32, #tpu.memory_space<vmem>>, vector<8x32xf32>
    %1 = arith.truncf %0 : vector<8x32xf32> to vector<8x32xbf16>
    %c0_1 = arith.constant 0 : index
    %c0_2 = arith.constant 0 : index
    %2 = vector.load %arg2[%c0_1, %c0_2] : memref<32x128xbf16, #tpu.memory_space<vmem>>, vector<32x128xbf16>
    %cst = arith.constant dense<0.000000e+00> : vector<8x128xf32>
    %3 = tpu.matmul %1, %2, %cst {dimension_numbers = #tpu.dot_dimension_numbers<[1], [0], [0], [1], [0, 0, 1, 1], [], []>} : vector<8x32xbf16>, vector<32x128xbf16>, vector<8x128xf32> -> vector<8x128xf32>
    %c0_3 = arith.constant 0 : index
    %c0_4 = arith.constant 0 : index
    %4 = vector.load %arg3[%c0_3, %c0_4] : memref<1x128xf32, #tpu.memory_space<vmem>>, vector<1x128xf32>
    %5 = vector.broadcast %4 : vector<1x128xf32> to vector<8x128xf32>
    %6 = arith.addf %3, %5 : vector<8x128xf32>
    %7 = arith.truncf %6 : vector<8x128xf32> to vector<8x128xbf16>
    %cst_5 = arith.constant 0.000000e+00 : bf16
    %8 = vector.broadcast %cst_5 : bf16 to vector<8x128xbf16>
    %9 = arith.maximumf %7, %8 : vector<8x128xbf16>
    %c0_6 = arith.constant 0 : index
    %c0_7 = arith.constant 0 : index
    %10 = vector.load %arg4[%c0_6, %c0_7] : memref<128x128xbf16, #tpu.memory_space<vmem>>, vector<128x128xbf16>
    %cst_8 = arith.constant dense<0.000000e+00> : vector<8x128xf32>
    %11 = tpu.matmul %9, %10, %cst_8 {dimension_numbers = #tpu.dot_dimension_numbers<[1], [0], [0], [1], [0, 0, 1, 1], [], []>} : vector<8x128xbf16>, vector<128x128xbf16>, vector<8x128xf32> -> vector<8x128xf32>
    %c0_9 = arith.constant 0 : index
    %c0_10 = arith.constant 0 : index
    %12 = vector.load %arg5[%c0_9, %c0_10] : memref<1x128xf32, #tpu.memory_space<vmem>>, vector<1x128xf32>
    %13 = vector.broadcast %12 : vector<1x128xf32> to vector<8x128xf32>
    %14 = arith.addf %11, %13 : vector<8x128xf32>
    %15 = arith.truncf %14 : vector<8x128xf32> to vector<8x128xbf16>
    %cst_11 = arith.constant 0.000000e+00 : bf16
    %16 = vector.broadcast %cst_11 : bf16 to vector<8x128xbf16>
    %17 = arith.maximumf %15, %16 : vector<8x128xbf16>
    %c0_12 = arith.constant 0 : index
    %c0_13 = arith.constant 0 : index
    %18 = vector.load %arg6[%c0_12, %c0_13] : memref<128x32xbf16, #tpu.memory_space<vmem>>, vector<128x32xbf16>
    %cst_14 = arith.constant dense<0.000000e+00> : vector<8x32xf32>
    %19 = tpu.matmul %17, %18, %cst_14 {dimension_numbers = #tpu.dot_dimension_numbers<[1], [0], [0], [1], [0, 0, 1, 1], [], []>} : vector<8x128xbf16>, vector<128x32xbf16>, vector<8x32xf32> -> vector<8x32xf32>
    %c0_15 = arith.constant 0 : index
    %c0_16 = arith.constant 0 : index
    %20 = vector.load %arg7[%c0_15, %c0_16] : memref<1x32xf32, #tpu.memory_space<vmem>>, vector<1x32xf32>
    %21 = vector.broadcast %20 : vector<1x32xf32> to vector<8x32xf32>
    %22 = arith.addf %19, %21 : vector<8x32xf32>
    %c0_17 = arith.constant 0 : index
    %c0_18 = arith.constant 0 : index
    %23 = vector.load %arg8[%c0_17, %c0_18] : memref<8x32xf32, #tpu.memory_space<vmem>>, vector<8x32xf32>
    tpu.vector_store %arg8[%c0_17, %c0_18], %22 {strides = array<i32>} : memref<8x32xf32, #tpu.memory_space<vmem>>, vector<8x32xf32>,
    return
  }
  func.func @transform_0(%arg0: i32) -> (i32, i32) {
    %c0_i32 = arith.constant 0 : i32
    %c0_i32_0 = arith.constant 0 : i32
    return %arg0, %c0_i32 : i32, i32
  }
  func.func @transform_1(%arg0: i32) -> (i32, i32) {
    %c0_i32 = arith.constant 0 : i32
    %c0_i32_0 = arith.constant 0 : i32
    %c0_i32_1 = arith.constant 0 : i32
    return %c0_i32, %c0_i32_0 : i32, i32
  }
  func.func @transform_2(%arg0: i32) -> (i32, i32) {
    %c0_i32 = arith.constant 0 : i32
    %c0_i32_0 = arith.constant 0 : i32
    %c0_i32_1 = arith.constant 0 : i32
    return %c0_i32, %c0_i32_0 : i32, i32
  }
  func.func @transform_3(%arg0: i32) -> (i32, i32) {
    %c0_i32 = arith.constant 0 : i32
    %c0_i32_0 = arith.constant 0 : i32
    %c0_i32_1 = arith.constant 0 : i32
    return %c0_i32, %c0_i32_0 : i32, i32
  }
  func.func @transform_4(%arg0: i32) -> (i32, i32) {
    %c0_i32 = arith.constant 0 : i32
    %c0_i32_0 = arith.constant 0 : i32
    %c0_i32_1 = arith.constant 0 : i32
    return %c0_i32, %c0_i32_0 : i32, i32
  }
  func.func @transform_5(%arg0: i32) -> (i32, i32) {
    %c0_i32 = arith.constant 0 : i32
    %c0_i32_0 = arith.constant 0 : i32
    %c0_i32_1 = arith.constant 0 : i32
    return %c0_i32, %c0_i32_0 : i32, i32
  }
  func.func @transform_6(%arg0: i32) -> (i32, i32) {
    %c0_i32 = arith.constant 0 : i32
    %c0_i32_0 = arith.constant 0 : i32
    %c0_i32_1 = arith.constant 0 : i32
    return %c0_i32, %c0_i32_0 : i32, i32
  }
  func.func @transform_7(%arg0: i32) -> (i32, i32) {
    %c0_i32 = arith.constant 0 : i32
    %c0_i32_0 = arith.constant 0 : i32
    return %arg0, %c0_i32 : i32, i32
  }
}

</mosaic_0001>

<llo_original>
// kernel: linear_residual_block.1
$region0: #{linear_residual_block.1}
  #allocation0 [shape = 'u32[]', space=smem, size = 0x4, offset = 0x4, fixed_abs, tag = 'smem constant byte address 0x4 - core index']
  #allocation1 [shape = 'u32[144,128]{1,0:T(1,128)}', space=vmem, size = 0x12000, scoped, tag = 'internal scratch']
  %s0 = inlined_call_operand.hbm [shape: f32[8,32], index: 0, kind: input, shape index: {}]
  %s1 = inlined_call_operand.vmem [shape: bf16[32,128], index: 1, kind: input, shape index: {}]
  %s2 = inlined_call_operand.vmem [shape: f32[1,128], index: 2, kind: input, shape index: {}]
  %s3 = inlined_call_operand.vmem [shape: bf16[128,128], index: 3, kind: input, shape index: {}]
  %s4 = inlined_call_operand.vmem [shape: f32[1,128], index: 4, kind: input, shape index: {}]
  %s5 = inlined_call_operand.vmem [shape: bf16[128,32], index: 5, kind: input, shape index: {}]
  %s6 = inlined_call_operand.vmem [shape: f32[1,32], index: 6, kind: input, shape index: {}]
  %s7 = inlined_call_operand.hbm [shape: f32[8,32], index: 7, kind: output, shape index: {}]
  %s8 = sld [smem:[#allocation0]]
  $region42: #{linear_residual_block.1} parent=0
    _
  %s10 = ssub.s32 1, %s8
  %s11 = scalar_select 0, %s10, %s8
  $region1: #{linear_residual_block.1} parent=0
    #allocation2 [shape = 'u8[4096]{0}', space=vmem, size = 0x1000, scoped, tag = 'input window, operand 0, single buffered']
    #allocation3 [shape = 's32[1]{0}', space=sflag, size = 0x4, scoped, tag = 'scoped memory for linear_residual_block.1']
    #allocation4 [shape = 's32[1]{0}', space=sflag, size = 0x4, scoped, tag = 'scoped memory for linear_residual_block.1']
    #allocation5 [shape = 'u8[4096]{0}', space=vmem, size = 0x1000, scoped, tag = 'output window, operand 0, single buffered']
    %12 = vsyncpa [#allocation3], 0
    %13 = vsyncpa [#allocation4], 0
    // Predicated region
    $region2: #{linear_residual_block.1} parent=1 // pred_check
      _
    $region3: #{linear_residual_block.1} parent=1 // pred_check_branch
      %15 = sbr.rel (0) target = $region5
    $region4: #{linear_residual_block.1} parent=1 // pred_region
      %s17 = ssub.s32 128, 128
      %18 = vsyncadd [#allocation3], %s17
      %s20 = sshll.u32 [#allocation2], 4
      %s21 = int_to_ptr.vmem [resolvable:$true] %s20
      %23 = dma.hbm_to_vmem [thread:$0]  %s0, 128, %s21, [#allocation3]
    $region5: #{linear_residual_block.1} parent=1 // pred_fallthru
      _
    // Predicated region
    $region6: #{linear_residual_block.1} parent=1 // pred_check
      _
    $region7: #{linear_residual_block.1} parent=1 // pred_check_branch
      %25 = sbr.rel (0) target = $region9
    $region8: #{linear_residual_block.1} parent=1 // pred_region
      _
    $region9: #{linear_residual_block.1} parent=1 // pred_fallthru
      _
    // Predicated region
    $region10: #{linear_residual_block.1} parent=1 // pred_check
      _
    $region11: #{linear_residual_block.1} parent=1 // pred_check_branch
      %27 = sbr.rel (0) target = $region13
    $region12: #{linear_residual_block.1} parent=1 // pred_region
      _
    $region13: #{linear_residual_block.1} parent=1 // pred_fallthru
      _
    // Predicated region
    $region14: #{linear_residual_block.1} parent=1 // pred_check
      _
    $region15: #{linear_residual_block.1} parent=1 // pred_check_branch
      %29 = sbr.rel (0) target = $region17
    $region16: #{linear_residual_block.1} parent=1 // pred_region
      _
    $region17: #{linear_residual_block.1} parent=1 // pred_fallthru
      _
    // Predicated region
    $region18: #{linear_residual_block.1} parent=1 // pred_check
      _
    $region19: #{linear_residual_block.1} parent=1 // pred_check_branch
      %31 = sbr.rel (0) target = $region21
    $region20: #{linear_residual_block.1} parent=1 // pred_region
      _
    $region21: #{linear_residual_block.1} parent=1 // pred_fallthru
      _
    // Predicated region
    $region22: #{linear_residual_block.1} parent=1 // pred_check
      _
    $region23: #{linear_residual_block.1} parent=1 // pred_check_branch
      %33 = sbr.rel (0) target = $region25
    $region24: #{linear_residual_block.1} parent=1 // pred_region
      _
    $region25: #{linear_residual_block.1} parent=1 // pred_fallthru
      _
    // Predicated region
    $region26: #{linear_residual_block.1} parent=1 // pred_check
      _
    $region27: #{linear_residual_block.1} parent=1 // pred_check_branch
      %35 = sbr.rel (0) target = $region29
    $region28: #{linear_residual_block.1} parent=1 // pred_region
      _
    $region29: #{linear_residual_block.1} parent=1 // pred_fallthru
      _
    // Predicated region
    $region30: #{linear_residual_block.1} parent=1 // pred_check
      _
    $region31: #{linear_residual_block.1} parent=1 // pred_check_branch
      %37 = sbr.rel (0) target = $region33
    $region32: #{linear_residual_block.1} parent=1 // pred_region
      %38 = dma.done [#allocation3], 128
    $region33: #{linear_residual_block.1} parent=1 // pred_fallthru
      _
    %v40 = vld [vmem:[#allocation2] sm:$0xff]
    %v41 = vpack.c.bf16 %v40, %v40
    %v42 = vld [vmem:[%s1] sm:$0xf]
    %v43 = vld [vmem:[%s1 + $0x4] sm:$0xf]
    %v44 = vld [vmem:[%s1 + $0x8] sm:$0xf]
    %v45 = vld [vmem:[%s1 + $0xc] sm:$0xf]
    %v46 = vld [vmem:[%s2] sm:$0x1]
    %v48 = vlaneseq
    %v49 = vshrl.u32 %v48, 7
    %v50 = vsub.s32 0, %v49
    %v51 = vrot.slane %v46, %v50
    %v57 = vunpack.c.l.b16 %v42
    %v58 = vunpack.c.l.b16 %v43
    %v59 = vunpack.c.l.b16 %v44
    %v60 = vunpack.c.l.b16 %v45
    %v61 = vpack.c.b16 %v58, %v57
    %v62 = vpack.c.b16 %v60, %v59
    %vm65 = vcmask 261120
    %v67 = vsel %vm65, %v41, 0
    %69 = vmatprep.subr.bf16.mxu0 0
    %70 = vmatpush1.bf16.msra.mxu0 %v61
    %71 = vmatprep.subr.bf16.mxu0 0
    %72 = vmatpush1.bf16.msra.mxu0 %v62
    %73 = vmatprep.subr.bf16.mxu0 0
    %74 = vmatpush1.bf16.msra.mxu0 0
    %75 = vmatprep.subr.bf16.mxu0 0
    %76 = vmatpush1.bf16.msra.mxu0 0
    %77 = vmatprep.subr.bf16.mxu0 0
    %78 = vmatpush1.bf16.msra.mxu0 0
    %79 = vmatprep.subr.bf16.mxu0 0
    %80 = vmatpush1.bf16.msra.mxu0 0
    %81 = vmatprep.subr.bf16.mxu0 0
    %82 = vmatpush1.bf16.msra.mxu0 0
    %83 = vmatprep.subr.bf16.mxu0 0
    %84 = vmatpush1.bf16.msra.mxu0 0
    %85 = vmatprep.subr.bf16.mxu0 0
    %86 = vmatpush1.bf16.msra.mxu0 0
    %87 = vmatprep.subr.bf16.mxu0 0
    %88 = vmatpush1.bf16.msra.mxu0 0
    %89 = vmatprep.subr.bf16.mxu0 0
    %90 = vmatpush1.bf16.msra.mxu0 0
    %91 = vmatprep.subr.bf16.mxu0 0
    %92 = vmatpush1.bf16.msra.mxu0 0
    %93 = vmatprep.subr.bf16.mxu0 0
    %94 = vmatpush1.bf16.msra.mxu0 0
    %95 = vmatprep.subr.bf16.mxu0 0
    %96 = vmatpush1.bf16.msra.mxu0 0
    %97 = vmatprep.subr.bf16.mxu0 0
    %98 = vmatpush1.bf16.msra.mxu0 0
    %99 = vmatprep.subr.bf16.mxu0 0
    %100 = vmatpush1.bf16.msra.mxu0 0
    %101 = vmatprep.mubr.bf16.mxu0 0
    %102 = vmatmul.mubr.bf16.gmra.mrb[0].mxu0 %v67
    %v103 = vpop.f32.mrb[0].mxu0
    %v104 = vadd.f32 %v51, %v103
    %v105 = vpop.f32.mrb[0].mxu0
    %v106 = vpop.f32.mrb[0].mxu0
    %v107 = vpop.f32.mrb[0].mxu0
    %108 = vdwg.mxu0
    %v109 = vpack.c.bf16 %v104, %v104
    %v110 = vmax.bf16 %v109, 0
    %v111 = vld [vmem:[%s3] sm:$0xf]
    %v112 = vld [vmem:[%s3 + $0x4] sm:$0xf]
    %v113 = vld [vmem:[%s3 + $0x8] sm:$0xf]
    %v114 = vld [vmem:[%s3 + $0xc] sm:$0xf]
    %v115 = vld [vmem:[%s3 + $0x10] sm:$0xf]
    %v116 = vld [vmem:[%s3 + $0x14] sm:$0xf]
    %v117 = vld [vmem:[%s3 + $0x18] sm:$0xf]
    %v118 = vld [vmem:[%s3 + $0x1c] sm:$0xf]
    %v119 = vld [vmem:[%s3 + $0x20] sm:$0xf]
    %v120 = vld [vmem:[%s3 + $0x24] sm:$0xf]
    %v121 = vld [vmem:[%s3 + $0x28] sm:$0xf]
    %v122 = vld [vmem:[%s3 + $0x2c] sm:$0xf]
    %v123 = vld [vmem:[%s3 + $0x30] sm:$0xf]
    %v124 = vld [vmem:[%s3 + $0x34] sm:$0xf]
    %v125 = vld [vmem:[%s3 + $0x38] sm:$0xf]
    %v126 = vld [vmem:[%s3 + $0x3c] sm:$0xf]
    %v127 = vld [vmem:[%s4] sm:$0x1]
    %v129 = vlaneseq
    %v130 = vshrl.u32 %v129, 7
    %v131 = vsub.s32 0, %v130
    %v132 = vrot.slane %v127, %v131
    %v150 = vunpack.c.l.b16 %v111
    %v151 = vunpack.c.l.b16 %v112
    %v152 = vunpack.c.l.b16 %v113
    %v153 = vunpack.c.l.b16 %v114
    %v154 = vunpack.c.l.b16 %v115
    %v155 = vunpack.c.l.b16 %v116
    %v156 = vunpack.c.l.b16 %v117
    %v157 = vunpack.c.l.b16 %v118
    %v158 = vunpack.c.l.b16 %v119
    %v159 = vunpack.c.l.b16 %v120
    %v160 = vunpack.c.l.b16 %v121
    %v161 = vunpack.c.l.b16 %v122
    %v162 = vunpack.c.l.b16 %v123
    %v163 = vunpack.c.l.b16 %v124
    %v164 = vunpack.c.l.b16 %v125
    %v165 = vunpack.c.l.b16 %v126
    %v166 = vpack.c.b16 %v151, %v150
    %v167 = vpack.c.b16 %v153, %v152
    %v168 = vpack.c.b16 %v155, %v154
    %v169 = vpack.c.b16 %v157, %v156
    %v170 = vpack.c.b16 %v159, %v158
    %v171 = vpack.c.b16 %v161, %v160
    %v172 = vpack.c.b16 %v163, %v162
    %v173 = vpack.c.b16 %v165, %v164
    %182 = vmatprep.subr.bf16.mxu0 0
    %183 = vmatpush1.bf16.msra.mxu0 %v166
    %184 = vmatprep.subr.bf16.mxu0 0
    %185 = vmatpush1.bf16.msra.mxu0 %v167
    %186 = vmatprep.subr.bf16.mxu0 0
    %187 = vmatpush1.bf16.msra.mxu0 %v168
    %188 = vmatprep.subr.bf16.mxu0 0
    %189 = vmatpush1.bf16.msra.mxu0 %v169
    %190 = vmatprep.subr.bf16.mxu0 0
    %191 = vmatpush1.bf16.msra.mxu0 %v170
    %192 = vmatprep.subr.bf16.mxu0 0
    %193 = vmatpush1.bf16.msra.mxu0 %v171
    %194 = vmatprep.subr.bf16.mxu0 0
    %195 = vmatpush1.bf16.msra.mxu0 %v172
    %196 = vmatprep.subr.bf16.mxu0 0
    %197 = vmatpush1.bf16.msra.mxu0 %v173
    %198 = vmatprep.subr.bf16.mxu0 0
    %199 = vmatpush1.bf16.msra.mxu0 0
    %200 = vmatprep.subr.bf16.mxu0 0
    %201 = vmatpush1.bf16.msra.mxu0 0
    %202 = vmatprep.subr.bf16.mxu0 0
    %203 = vmatpush1.bf16.msra.mxu0 0
    %204 = vmatprep.subr.bf16.mxu0 0
    %205 = vmatpush1.bf16.msra.mxu0 0
    %206 = vmatprep.subr.bf16.mxu0 0
    %207 = vmatpush1.bf16.msra.mxu0 0
    %208 = vmatprep.subr.bf16.mxu0 0
    %209 = vmatpush1.bf16.msra.mxu0 0
    %210 = vmatprep.subr.bf16.mxu0 0
    %211 = vmatpush1.bf16.msra.mxu0 0
    %212 = vmatprep.subr.bf16.mxu0 0
    %213 = vmatpush1.bf16.msra.mxu0 0
    %214 = vmatprep.mubr.bf16.mxu0 0
    %215 = vmatmul.mubr.bf16.gmra.mrb[0].mxu0 %v110
    %v216 = vpop.f32.mrb[0].mxu0
    %v217 = vadd.f32 %v132, %v216
    %v218 = vpop.f32.mrb[0].mxu0
    %v219 = vpop.f32.mrb[0].mxu0
    %v220 = vpop.f32.mrb[0].mxu0
    %221 = vdwg.mxu0
    %v222 = vpack.c.bf16 %v217, %v217
    %v223 = vmax.bf16 %v222, 0
    %v224 = vld [vmem:[%s5] sm:$0xf]
    %v225 = vld [vmem:[%s5 + $0x4] sm:$0xf]
    %v226 = vld [vmem:[%s5 + $0x8] sm:$0xf]
    %v227 = vld [vmem:[%s5 + $0xc] sm:$0xf]
    %v228 = vld [vmem:[%s5 + $0x10] sm:$0xf]
    %v229 = vld [vmem:[%s5 + $0x14] sm:$0xf]
    %v230 = vld [vmem:[%s5 + $0x18] sm:$0xf]
    %v231 = vld [vmem:[%s5 + $0x1c] sm:$0xf]
    %v232 = vld [vmem:[%s5 + $0x20] sm:$0xf]
    %v233 = vld [vmem:[%s5 + $0x24] sm:$0xf]
    %v234 = vld [vmem:[%s5 + $0x28] sm:$0xf]
    %v235 = vld [vmem:[%s5 + $0x2c] sm:$0xf]
    %v236 = vld [vmem:[%s5 + $0x30] sm:$0xf]
    %v237 = vld [vmem:[%s5 + $0x34] sm:$0xf]
    %v238 = vld [vmem:[%s5 + $0x38] sm:$0xf]
    %v239 = vld [vmem:[%s5 + $0x3c] sm:$0xf]
    %v240 = vld [vmem:[%s6] sm:$0x1]
    %v242 = vlaneseq
    %v243 = vshrl.u32 %v242, 7
    %v244 = vsub.s32 0, %v243
    %v245 = vrot.slane %v240, %v244
    %v263 = vunpack.c.l.b16 %v224
    %v264 = vunpack.c.l.b16 %v225
    %v265 = vunpack.c.l.b16 %v226
    %v266 = vunpack.c.l.b16 %v227
    %v267 = vunpack.c.l.b16 %v228
    %v268 = vunpack.c.l.b16 %v229
    %v269 = vunpack.c.l.b16 %v230
    %v270 = vunpack.c.l.b16 %v231
    %v271 = vunpack.c.l.b16 %v232
    %v272 = vunpack.c.l.b16 %v233
    %v273 = vunpack.c.l.b16 %v234
    %v274 = vunpack.c.l.b16 %v235
    %v275 = vunpack.c.l.b16 %v236
    %v276 = vunpack.c.l.b16 %v237
    %v277 = vunpack.c.l.b16 %v238
    %v278 = vunpack.c.l.b16 %v239
    %v279 = vpack.c.b16 %v264, %v263
    %v280 = vpack.c.b16 %v266, %v265
    %v281 = vpack.c.b16 %v268, %v267
    %v282 = vpack.c.b16 %v270, %v269
    %v283 = vpack.c.b16 %v272, %v271
    %v284 = vpack.c.b16 %v274, %v273
    %v285 = vpack.c.b16 %v276, %v275
    %v286 = vpack.c.b16 %v278, %v277
    %295 = vmatprep.subr.bf16.mxu0 0
    %296 = vmatpush1.bf16.msra.mxu0 %v279
    %297 = vmatprep.subr.bf16.mxu0 0
    %298 = vmatpush1.bf16.msra.mxu0 %v280
    %299 = vmatprep.subr.bf16.mxu0 0
    %300 = vmatpush1.bf16.msra.mxu0 %v281
    %301 = vmatprep.subr.bf16.mxu0 0
    %302 = vmatpush1.bf16.msra.mxu0 %v282
    %303 = vmatprep.subr.bf16.mxu0 0
    %304 = vmatpush1.bf16.msra.mxu0 %v283
    %305 = vmatprep.subr.bf16.mxu0 0
    %306 = vmatpush1.bf16.msra.mxu0 %v284
    %307 = vmatprep.subr.bf16.mxu0 0
    %308 = vmatpush1.bf16.msra.mxu0 %v285
    %309 = vmatprep.subr.bf16.mxu0 0
    %310 = vmatpush1.bf16.msra.mxu0 %v286
    %311 = vmatprep.subr.bf16.mxu0 0
    %312 = vmatpush1.bf16.msra.mxu0 0
    %313 = vmatprep.subr.bf16.mxu0 0
    %314 = vmatpush1.bf16.msra.mxu0 0
    %315 = vmatprep.subr.bf16.mxu0 0
    %316 = vmatpush1.bf16.msra.mxu0 0
    %317 = vmatprep.subr.bf16.mxu0 0
    %318 = vmatpush1.bf16.msra.mxu0 0
    %319 = vmatprep.subr.bf16.mxu0 0
    %320 = vmatpush1.bf16.msra.mxu0 0
    %321 = vmatprep.subr.bf16.mxu0 0
    %322 = vmatpush1.bf16.msra.mxu0 0
    %323 = vmatprep.subr.bf16.mxu0 0
    %324 = vmatpush1.bf16.msra.mxu0 0
    %325 = vmatprep.subr.bf16.mxu0 0
    %326 = vmatpush1.bf16.msra.mxu0 0
    %327 = vmatprep.mubr.bf16.mxu0 0
    %328 = vmatmul.mubr.bf16.gmra.mrb[0].mxu0 %v223
    %v329 = vpop.f32.mrb[0].mxu0
    %v330 = vadd.f32 %v245, %v329
    %v331 = vpop.f32.mrb[0].mxu0
    %v332 = vpop.f32.mrb[0].mxu0
    %v333 = vpop.f32.mrb[0].mxu0
    %334 = vdwg.mxu0
    %335 = vst.msk [vmem:[#allocation5] sm:$0xff] %vm65, %v330
    // Predicated region
    $region34: #{linear_residual_block.1} parent=1 // pred_check
      _
    $region35: #{linear_residual_block.1} parent=1 // pred_check_branch
      %337 = sbr.rel (0) target = $region37
    $region36: #{linear_residual_block.1} parent=1 // pred_region
      %s339 = ssub.s32 128, 128
      %340 = vsyncadd [#allocation4], %s339
      %s342 = sshll.u32 [#allocation5], 4
      %s343 = int_to_ptr.vmem [resolvable:$true] %s342
      %345 = dma.vmem_to_hbm [thread:$0]  %s343, 128, %s7, [#allocation4]
    $region37: #{linear_residual_block.1} parent=1 // pred_fallthru
      _
    // Predicated region
    $region38: #{linear_residual_block.1} parent=1 // pred_check
      _
    $region39: #{linear_residual_block.1} parent=1 // pred_check_branch
      %347 = sbr.rel (0) target = $region41
    $region40: #{linear_residual_block.1} parent=1 // pred_region
      %348 = dma.done [#allocation4], 128
    $region41: #{linear_residual_block.1} parent=1 // pred_fallthru
      _
    %349 = vsyncpa [#allocation3], 1
    %350 = vsyncpa [#allocation4], 1

</llo_original>
